<compile_context>
chip_gen: v6e
topology: v6e:2x2x1
jax: 0.10.0
libtpu: 0.0.40
codegen_flags: <defaults>
</compile_context>

<pallas_src>
import functools

import jax
import jax.numpy as jnp
import numpy as np
from jax.experimental import pallas as pl
from jax.experimental.pallas import tpu as pltpu


# ----------------------------------------------------------------------------
# Pallas kernel: one chunk of the geodesic random walk
# ----------------------------------------------------------------------------
def _grw_kernel(x0_ref, a0_ref, a1_ref, tm_ref, eps_ref, out_ref, *,
                steps_per_chunk):
    """Per-block shapes (lane-dense):
        x0/a0/a1/tm : (TR, C)      per-element walk coefficients
        eps         : (spc, TR, C) host-drawn standard normals for this chunk
        out         : (2, TR, C)   packed [x_t ; x_inv]; out[0] also carries
                                   the walk state across step-chunks (its block
                                   index is constant along the chunk axis).
      Per-step scale: sqrt(a0 + k*a1)  (== sqrt(p)*sigma_k of the reference);
      the torus wrap (where tm==1) is applied once per chunk (exact mod 1).
    """
    c = pl.program_id(1)

    @pl.when(c == 0)
    def _():
        out_ref[0] = x0_ref[...]

    a1 = a1_ref[...]
    tm = tm_ref[...]              # 1.0 -> torus element, 0.0 -> Euclidean
    x = out_ref[0]
    base = (c * steps_per_chunk).astype(jnp.float32)
    s = a0_ref[...] + base * a1   # sigma_k^2 * p, carried as a running sum

    for k in range(steps_per_chunk):        # small static unroll
        x = x + jnp.sqrt(s) * eps_ref[k]    # Euclidean exp map (drift = 0)
        s = s + a1

    x = x - tm * jnp.floor(x)               # torus exp: wrap to [0, 1)
    out_ref[0] = x                          # carried state / final x_t

    @pl.when(c == pl.num_programs(1) - 1)
    def _():
        d = x - x0_ref[...]                  # pushforward: log(x_0, x_t)
        out_ref[1] = d - tm * jnp.floor(d + 0.5)   # torus log: [-0.5, 0.5)


def _pallas_grw_fused(x0_flat, a0_flat, a1_flat, tm_flat, eps_steps, *,
                      lane_cols=512, max_tile_rows=256, max_steps_per_chunk=8):
    """Run the fused walk on a flat element slab.
    Inputs: 1-D f32 of length L (coeffs) and eps_steps of shape (N, L).
    Returns out = (2, R_pad, lane_cols) f32 packed [x_t ; x_inv]."""
    L = int(x0_flat.shape[0])
    N = int(eps_steps.shape[0])

    # ---- row tiling (adaptive; keep >=2 row tiles when possible for v7x) ----
    R_raw = -(-L // lane_cols)
    R8 = -(-R_raw // 8) * 8
    tile_rows = min(max_tile_rows, R8)
    if R8 >= 16:
        tile_rows = min(tile_rows, max(8, (R8 // 2) // 8 * 8))
    R_pad = -(-R8 // tile_rows) * tile_rows
    L_pad = R_pad * lane_cols

    # ---- step chunking (independent of divisibility: zero-pad tail steps) ---
    spc = max(1, min(max_steps_per_chunk, N))
    n_chunks = -(-N // spc)
    N_pad = n_chunks * spc

    def pad2d(v):
        return jnp.pad(v, (0, L_pad - L)).reshape(R_pad, lane_cols)

    x0_2d, a0_2d, a1_2d, tm_2d = (pad2d(v) for v in
                                  (x0_flat, a0_flat, a1_flat, tm_flat))
    eps_3d = jnp.pad(eps_steps, ((0, N_pad - N), (0, L_pad - L))
                     ).reshape(N_pad, R_pad, lane_cols)

    grid = (R_pad // tile_rows, n_chunks)
    kernel = functools.partial(_grw_kernel, steps_per_chunk=spc)

    # VMEM per block (double-buffered): 4 coeff streams + spc eps slices + out
    #   ~ (4 + spc + 2) * tile_rows * lane_cols * 4B * 2  ~= 14 MiB at
    #   tile_rows=256, spc=8 -> fits the 32 MiB scoped limit (v7x: 64 MiB phys).
    out = pl.pallas_call(
        kernel,
        out_shape=jax.ShapeDtypeStruct((2, R_pad, lane_cols), jnp.float32),
        grid_spec=pltpu.PrefetchScalarGridSpec(
            num_scalar_prefetch=0,
            grid=grid,
            in_specs=[pl.BlockSpec((tile_rows, lane_cols),
                                   lambda i, c: (i, 0))
                      for _ in range(4)]
                     + [pl.BlockSpec((spc, tile_rows, lane_cols),
                                     lambda i, c: (c, i, 0))],
            out_specs=pl.BlockSpec((2, tile_rows, lane_cols),
                                   lambda i, c: (0, i, 0)),
        ),
        compiler_params=pltpu.CompilerParams(
            dimension_semantics=("parallel", "arbitrary"),
            vmem_limit_bytes=32 * 1024 * 1024),
    )(x0_2d, a0_2d, a1_2d, tm_2d, eps_3d)
    return out


# ----------------------------------------------------------------------------
# Pure-JAX reference (mirrors BaseGRW.grw / pushforward; replays the host eps)
# ----------------------------------------------------------------------------
def _ref_grw(x0, t_rows, eps, b0, bf, torus, skip):
    x = x0
    for k in range(eps.shape[0]):
        if skip:                                 # N == 1: n = T, p = 1
            sigma = jnp.sqrt(b0 * t_rows + 0.5 * (bf - b0) * t_rows ** 2)
            w = sigma * eps[k]
        else:                                    # n = k*t, p = t
            n = float(k) * t_rows
            sigma = jnp.sqrt(b0 + (bf - b0) * n)
            w = jnp.sqrt(t_rows) * sigma * eps[k]
        x = x + w
        if torus:
            x = x - jnp.floor(x)                 # module wraps every step
    d = x - x0
    if torus:
        d = d - jnp.floor(d + 0.5)
    return x, d


def _assert_close(a, b, torus, atol=5e-5):
    a = np.asarray(a, np.float64)
    b = np.asarray(b, np.float64)
    if torus:
        # kernel wraps per chunk, reference per step -> compare on the circle
        d = a - b
        d = d - np.round(d)
        np.testing.assert_allclose(d, np.zeros_like(d), atol=atol)
    else:
        np.testing.assert_allclose(a, b, rtol=1e-4, atol=atol)


# ----------------------------------------------------------------------------
# BaseGRW-equivalent module wrapper (score_fn=None path of forward())
# ----------------------------------------------------------------------------
class BaseGRWPallas:
    def __init__(self, N=4, forward_algo=None):
        self.N = N
        self.forward_algo = forward_algo
        # deterministic "parameters": diffusion schedule (b_0, b_f) per manifold
        self.b_m = {"frac_coords": (0.1, 2.0), "lattices": (0.05, 1.0)}
        self.manifold_cfg = {
            "frac_coords": dict(torus=True, per_atom=True),
            "lattices": dict(torus=False, per_atom=False),
        }

    def forward(self, x_0, t, num_atoms, key, N=None):
        # score_fn is None -> scores == 0 and no 'atom_types' manifold, so
        # transform()/retransform() are identity here.
        skip = self.forward_algo == "skip"
        if skip:
            N = 1
        elif N is None:
            N = self.N

        num_atoms_np = np.asarray(num_atoms)
        total_atoms = int(num_atoms_np.sum())
        t = jnp.asarray(t, jnp.float32)
        step_size = t / float(N)                       # p = T/N per crystal

        # Build one fused, lane-dense flat slab across both manifolds.
        flats_x, flats_a0, flats_a1, flats_tm = [], [], [], []
        meta = {}
        off = 0
        for f, cfg in self.manifold_cfg.items():
            xf = jnp.asarray(x_0[f], jnp.float32)
            orig_shape = xf.shape
            ncomp = int(np.prod(orig_shape[1:]))
            x_flat = xf.reshape(-1)
            if cfg["per_atom"]:
                t_rows = jnp.repeat(step_size, jnp.asarray(num_atoms_np),
                                    total_repeat_length=total_atoms)
            else:
                t_rows = step_size
            t_el = jnp.repeat(t_rows, ncomp)           # per element
            b0, bf = self.b_m[f]
            if skip:   # sqrt(p)*sigma with p=1, n=T -> sqrt(b0*T + .5(bf-b0)T^2)
                a0 = b0 * t_el + 0.5 * (bf - b0) * t_el * t_el
                a1 = jnp.zeros_like(t_el)
            else:      # sqrt(t)*sqrt(b0+(bf-b0)*k*t) == sqrt(b0*t + (bf-b0)*k*t^2)
                a0 = b0 * t_el
                a1 = (bf - b0) * t_el * t_el
            tmsk = jnp.full_like(t_el, 1.0 if cfg["torus"] else 0.0)
            size = int(x_flat.shape[0])
            meta[f] = (off, size, orig_shape)
            off += size
            flats_x.append(x_flat); flats_a0.append(a0)
            flats_a1.append(a1); flats_tm.append(tmsk)

        L = off
        # Noise for the whole walk, drawn on the host with jax.random and
        # streamed into the kernel (no in-kernel PRNG -> lowers everywhere).
        eps = jax.random.normal(key, (N, L), dtype=jnp.float32)

        out = _pallas_grw_fused(jnp.concatenate(flats_x),
                                jnp.concatenate(flats_a0),
                                jnp.concatenate(flats_a1),
                                jnp.concatenate(flats_tm),
                                eps)

        xt_flat = out[0].reshape(-1)[:L]
        xi_flat = out[1].reshape(-1)[:L]

        x_t, x_inv, eps_used = {}, {}, {}
        for f, (o, s, shp) in meta.items():
            x_t[f] = xt_flat[o:o + s].reshape(shp)
            x_inv[f] = xi_flat[o:o + s].reshape(shp)
            eps_used[f] = eps[:, o:o + s].reshape((N,) + shp)
        return x_t, x_inv, eps_used


# ----------------------------------------------------------------------------
if __name__ == "__main__":
    key = jax.random.PRNGKey(0)
    k_frac, k_lat, k_t, k_eps = jax.random.split(key, 4)

    B = 2                       # crystals in batch
    num_atoms = [9, 7]          # atoms per crystal -> 16 total
    A = sum(num_atoms)
    N_steps = 4

    x_0 = {
        "frac_coords": jax.random.uniform(k_frac, (A, 3), dtype=jnp.float32),
        "lattices": jax.random.normal(k_lat, (B, 3, 3), dtype=jnp.float32),
    }
    t = jax.random.uniform(k_t, (B,), dtype=jnp.float32, minval=0.2, maxval=1.0)
    num_atoms_np = np.asarray(num_atoms)

    for algo in (None, "skip"):
        model = BaseGRWPallas(N=N_steps, forward_algo=algo)
        x_t, x_inv, eps_used = model.forward(x_0, t, num_atoms, key=k_eps)
        jax.block_until_ready((x_t, x_inv))

        # Verify against a pure-JAX reference of the module semantics, replaying
        # the same host-drawn noise the kernel consumed.
        N_eff = 1 if algo == "skip" else N_steps
        step_size = t / float(N_eff)
        for f, cfg in model.manifold_cfg.items():
            xf = x_0[f]
            x2d = xf.reshape(xf.shape[0], -1)
            if cfg["per_atom"]:
                t_rows = jnp.repeat(step_size, jnp.asarray(num_atoms_np),
                                    total_repeat_length=A)[:, None]
            else:
                t_rows = step_size[:, None]
            b0, bf = model.b_m[f]
            eps2d = eps_used[f].reshape(N_eff, x2d.shape[0], x2d.shape[1])
            ref_xt, ref_xi = _ref_grw(x2d, t_rows, eps2d, b0, bf,
                                      cfg["torus"], skip=(algo == "skip"))
            _assert_close(np.asarray(x_t[f]).reshape(x2d.shape),
                          np.asarray(ref_xt), cfg["torus"])
            _assert_close(np.asarray(x_inv[f]).reshape(x2d.shape),
                          np.asarray(ref_xi), cfg["torus"])

    print("KERNEL_OK")
</pallas_src>

<mosaic_0001>
module attributes {stable_mosaic.version = 11 : i64} {
  func.func @_grw_kernel(%arg0: i32, %arg1: i32, %arg2: memref<8x512xf32, #tpu.memory_space<vmem>>, %arg3: memref<8x512xf32, #tpu.memory_space<vmem>>, %arg4: memref<8x512xf32, #tpu.memory_space<vmem>>, %arg5: memref<8x512xf32, #tpu.memory_space<vmem>>, %arg6: memref<4x8x512xf32, #tpu.memory_space<vmem>>, %arg7: memref<2x8x512xf32, #tpu.memory_space<vmem>>) attributes {dimension_semantics = [#tpu.dimension_semantics<parallel>, #tpu.dimension_semantics<arbitrary>], iteration_bounds = array<i64: 1, 1>, scalar_prefetch = 0 : i64, scratch_operands = 0 : i64, tpu.core_type = #tpu.core_type<tc>, window_params = [{transform_indices = @transform_0, window_bounds = array<i64: 8, 512>}, {transform_indices = @transform_1, window_bounds = array<i64: 8, 512>}, {transform_indices = @transform_2, window_bounds = array<i64: 8, 512>}, {transform_indices = @transform_3, window_bounds = array<i64: 8, 512>}, {transform_indices = @transform_4, window_bounds = array<i64: 4, 8, 512>}, {transform_indices = @transform_5, window_bounds = array<i64: 2, 8, 512>}]} {
    %c0_i32 = arith.constant 0 : i32
    %0 = arith.cmpi eq, %arg1, %c0_i32 : i32
    %1 = arith.extui %0 : i1 to i32
    %c0_i32_0 = arith.constant 0 : i32
    %2 = arith.cmpi ne, %1, %c0_i32_0 : i32
    scf.if %2 {
      %c0_23 = arith.constant 0 : index
      %c0_24 = arith.constant 0 : index
      %45 = vector.load %arg2[%c0_23, %c0_24] : memref<8x512xf32, #tpu.memory_space<vmem>>, vector<8x512xf32>
      %c0_25 = arith.constant 0 : index
      %c0_26 = arith.constant 0 : index
      %c0_27 = arith.constant 0 : index
      %46 = vector.load %arg7[%c0_25, %c0_26, %c0_27] : memref<2x8x512xf32, #tpu.memory_space<vmem>>, vector<1x8x512xf32>
      %47 = vector.shape_cast %46 : vector<1x8x512xf32> to vector<8x512xf32>
      %48 = vector.shape_cast %45 : vector<8x512xf32> to vector<1x8x512xf32>
      tpu.vector_store %arg7[%c0_25, %c0_26, %c0_27], %48 {strides = array<i32>} : memref<2x8x512xf32, #tpu.memory_space<vmem>>, vector<1x8x512xf32>,
    } else {
    }
    %c0 = arith.constant 0 : index
    %c0_1 = arith.constant 0 : index
    %3 = vector.load %arg4[%c0, %c0_1] : memref<8x512xf32, #tpu.memory_space<vmem>>, vector<8x512xf32>
    %c0_2 = arith.constant 0 : index
    %c0_3 = arith.constant 0 : index
    %4 = vector.load %arg5[%c0_2, %c0_3] : memref<8x512xf32, #tpu.memory_space<vmem>>, vector<8x512xf32>
    %c0_4 = arith.constant 0 : index
    %c0_5 = arith.constant 0 : index
    %c0_6 = arith.constant 0 : index
    %5 = vector.load %arg7[%c0_4, %c0_5, %c0_6] : memref<2x8x512xf32, #tpu.memory_space<vmem>>, vector<1x8x512xf32>
    %6 = vector.shape_cast %5 : vector<1x8x512xf32> to vector<8x512xf32>
    %c4_i32 = arith.constant 4 : i32
    %7 = arith.muli %arg1, %c4_i32 : i32
    %8 = arith.sitofp %7 : i32 to f32
    %c0_7 = arith.constant 0 : index
    %c0_8 = arith.constant 0 : index
    %9 = vector.load %arg3[%c0_7, %c0_8] : memref<8x512xf32, #tpu.memory_space<vmem>>, vector<8x512xf32>
    %10 = vector.broadcast %8 : f32 to vector<8x512xf32>
    %11 = arith.mulf %10, %3 : vector<8x512xf32>
    %12 = arith.addf %9, %11 : vector<8x512xf32>
    %13 = math.sqrt %12 : vector<8x512xf32>
    %c0_9 = arith.constant 0 : index
    %c0_10 = arith.constant 0 : index
    %c0_11 = arith.constant 0 : index
    %14 = vector.load %arg6[%c0_9, %c0_10, %c0_11] : memref<4x8x512xf32, #tpu.memory_space<vmem>>, vector<1x8x512xf32>
    %15 = vector.shape_cast %14 : vector<1x8x512xf32> to vector<8x512xf32>
    %16 = arith.mulf %13, %15 : vector<8x512xf32>
    %17 = arith.addf %6, %16 : vector<8x512xf32>
    %18 = arith.addf %12, %3 : vector<8x512xf32>
    %19 = math.sqrt %18 : vector<8x512xf32>
    %c1 = arith.constant 1 : index
    %c0_12 = arith.constant 0 : index
    %c0_13 = arith.constant 0 : index
    %20 = vector.load %arg6[%c1, %c0_12, %c0_13] : memref<4x8x512xf32, #tpu.memory_space<vmem>>, vector<1x8x512xf32>
    %21 = vector.shape_cast %20 : vector<1x8x512xf32> to vector<8x512xf32>
    %22 = arith.mulf %19, %21 : vector<8x512xf32>
    %23 = arith.addf %17, %22 : vector<8x512xf32>
    %24 = arith.addf %18, %3 : vector<8x512xf32>
    %25 = math.sqrt %24 : vector<8x512xf32>
    %c2 = arith.constant 2 : index
    %c0_14 = arith.constant 0 : index
    %c0_15 = arith.constant 0 : index
    %26 = vector.load %arg6[%c2, %c0_14, %c0_15] : memref<4x8x512xf32, #tpu.memory_space<vmem>>, vector<1x8x512xf32>
    %27 = vector.shape_cast %26 : vector<1x8x512xf32> to vector<8x512xf32>
    %28 = arith.mulf %25, %27 : vector<8x512xf32>
    %29 = arith.addf %23, %28 : vector<8x512xf32>
    %30 = arith.addf %24, %3 : vector<8x512xf32>
    %31 = math.sqrt %30 : vector<8x512xf32>
    %c3 = arith.constant 3 : index
    %c0_16 = arith.constant 0 : index
    %c0_17 = arith.constant 0 : index
    %32 = vector.load %arg6[%c3, %c0_16, %c0_17] : memref<4x8x512xf32, #tpu.memory_space<vmem>>, vector<1x8x512xf32>
    %33 = vector.shape_cast %32 : vector<1x8x512xf32> to vector<8x512xf32>
    %34 = arith.mulf %31, %33 : vector<8x512xf32>
    %35 = arith.addf %29, %34 : vector<8x512xf32>
    %36 = math.floor %35 : vector<8x512xf32>
    %37 = arith.mulf %4, %36 : vector<8x512xf32>
    %38 = arith.subf %35, %37 : vector<8x512xf32>
    %c0_18 = arith.constant 0 : index
    %c0_19 = arith.constant 0 : index
    %c0_20 = arith.constant 0 : index
    %39 = vector.load %arg7[%c0_18, %c0_19, %c0_20] : memref<2x8x512xf32, #tpu.memory_space<vmem>>, vector<1x8x512xf32>
    %40 = vector.shape_cast %39 : vector<1x8x512xf32> to vector<8x512xf32>
    %41 = vector.shape_cast %38 : vector<8x512xf32> to vector<1x8x512xf32>
    tpu.vector_store %arg7[%c0_18, %c0_19, %c0_20], %41 {strides = array<i32>} : memref<2x8x512xf32, #tpu.memory_space<vmem>>, vector<1x8x512xf32>,
    %c0_i32_21 = arith.constant 0 : i32
    %42 = arith.cmpi eq, %arg1, %c0_i32_21 : i32
    %43 = arith.extui %42 : i1 to i32
    %c0_i32_22 = arith.constant 0 : i32
    %44 = arith.cmpi ne, %43, %c0_i32_22 : i32
    scf.if %44 {
      %c0_23 = arith.constant 0 : index
      %c0_24 = arith.constant 0 : index
      %45 = vector.load %arg2[%c0_23, %c0_24] : memref<8x512xf32, #tpu.memory_space<vmem>>, vector<8x512xf32>
      %46 = arith.subf %38, %45 : vector<8x512xf32>
      %cst = arith.constant 5.000000e-01 : f32
      %47 = vector.broadcast %cst : f32 to vector<8x512xf32>
      %48 = arith.addf %46, %47 : vector<8x512xf32>
      %49 = math.floor %48 : vector<8x512xf32>
      %50 = arith.mulf %4, %49 : vector<8x512xf32>
      %51 = arith.subf %46, %50 : vector<8x512xf32>
      %c1_25 = arith.constant 1 : index
      %c0_26 = arith.constant 0 : index
      %c0_27 = arith.constant 0 : index
      %52 = vector.load %arg7[%c1_25, %c0_26, %c0_27] : memref<2x8x512xf32, #tpu.memory_space<vmem>>, vector<1x8x512xf32>
      %53 = vector.shape_cast %52 : vector<1x8x512xf32> to vector<8x512xf32>
      %54 = vector.shape_cast %51 : vector<8x512xf32> to vector<1x8x512xf32>
      tpu.vector_store %arg7[%c1_25, %c0_26, %c0_27], %54 {strides = array<i32>} : memref<2x8x512xf32, #tpu.memory_space<vmem>>, vector<1x8x512xf32>,
    } else {
    }
    return
  }
  func.func @transform_0(%arg0: i32, %arg1: i32) -> (i32, i32) {
    %c0_i32 = arith.constant 0 : i32
    %c0_i32_0 = arith.constant 0 : i32
    return %arg0, %c0_i32 : i32, i32
  }
  func.func @transform_1(%arg0: i32, %arg1: i32) -> (i32, i32) {
    %c0_i32 = arith.constant 0 : i32
    %c0_i32_0 = arith.constant 0 : i32
    return %arg0, %c0_i32 : i32, i32
  }
  func.func @transform_2(%arg0: i32, %arg1: i32) -> (i32, i32) {
    %c0_i32 = arith.constant 0 : i32
    %c0_i32_0 = arith.constant 0 : i32
    return %arg0, %c0_i32 : i32, i32
  }
  func.func @transform_3(%arg0: i32, %arg1: i32) -> (i32, i32) {
    %c0_i32 = arith.constant 0 : i32
    %c0_i32_0 = arith.constant 0 : i32
    return %arg0, %c0_i32 : i32, i32
  }
  func.func @transform_4(%arg0: i32, %arg1: i32) -> (i32, i32, i32) {
    %c0_i32 = arith.constant 0 : i32
    %c0_i32_0 = arith.constant 0 : i32
    return %arg1, %arg0, %c0_i32 : i32, i32, i32
  }
  func.func @transform_5(%arg0: i32, %arg1: i32) -> (i32, i32, i32) {
    %c0_i32 = arith.constant 0 : i32
    %c0_i32_0 = arith.constant 0 : i32
    %c0_i32_1 = arith.constant 0 : i32
    return %c0_i32, %arg0, %c0_i32_0 : i32, i32, i32
  }
}

</mosaic_0001>

<llo_original>
// kernel: tpu_custom_call.1
$region0: #{tpu_custom_call.1}
  #allocation0 [shape = 'u32[]', space=smem, size = 0x4, offset = 0x4, fixed_abs, tag = 'smem constant byte address 0x4 - core index']
  #allocation1 [shape = 'u32[144,128]{1,0:T(1,128)}', space=vmem, size = 0x12000, scoped, tag = 'internal scratch']
  %s0 = inlined_call_operand.hbm [shape: f32[8,512], index: 0, kind: input, shape index: {}]
  %s1 = inlined_call_operand.hbm [shape: f32[8,512], index: 1, kind: input, shape index: {}]
  %s2 = inlined_call_operand.hbm [shape: f32[8,512], index: 2, kind: input, shape index: {}]
  %s3 = inlined_call_operand.hbm [shape: f32[8,512], index: 3, kind: input, shape index: {}]
  %s4 = inlined_call_operand.hbm [shape: f32[4,8,512], index: 4, kind: input, shape index: {}]
  %s5 = inlined_call_operand.hbm [shape: f32[2,8,512], index: 5, kind: output, shape index: {}]
  %s6 = sld [smem:[#allocation0]]
  $region58: #{tpu_custom_call.1} parent=0
    _
  %s8 = ssub.s32 1, %s6
  %s9 = scalar_select 0, %s8, %s6
  $region1: #{tpu_custom_call.1} parent=0
    #allocation2 [shape = 'u8[16384]{0}', space=vmem, size = 0x4000, scoped, tag = 'input window, operand 0, single buffered']
    #allocation3 [shape = 's32[1]{0}', space=sflag, size = 0x4, scoped, tag = 'scoped memory for tpu_custom_call.1']
    #allocation4 [shape = 's32[1]{0}', space=sflag, size = 0x4, scoped, tag = 'scoped memory for tpu_custom_call.1']
    #allocation5 [shape = 'u8[16384]{0}', space=vmem, size = 0x4000, scoped, tag = 'input window, operand 1, single buffered']
    #allocation6 [shape = 's32[1]{0}', space=sflag, size = 0x4, scoped, tag = 'scoped memory for tpu_custom_call.1']
    #allocation7 [shape = 'u8[16384]{0}', space=vmem, size = 0x4000, scoped, tag = 'input window, operand 2, single buffered']
    #allocation8 [shape = 'u8[16384]{0}', space=vmem, size = 0x4000, scoped, tag = 'input window, operand 3, single buffered']
    #allocation9 [shape = 's32[1]{0}', space=sflag, size = 0x4, scoped, tag = 'scoped memory for tpu_custom_call.1']
    #allocation10 [shape = 'u8[65536]{0}', space=vmem, size = 0x10000, scoped, tag = 'input window, operand 4, single buffered']
    #allocation11 [shape = 'u8[32768]{0}', space=vmem, size = 0x8000, scoped, tag = 'output window, operand 0, single buffered']
    %10 = vsyncpa [#allocation3], 0
    %11 = vsyncpa [#allocation6], 0
    %12 = vsyncpa [#allocation9], 0
    %13 = vsyncpa [#allocation4], 0
    // Predicated region
    $region2: #{tpu_custom_call.1} parent=1 // pred_check
      _
    $region3: #{tpu_custom_call.1} parent=1 // pred_check_branch
      %15 = sbr.rel (0) target = $region5
    $region4: #{tpu_custom_call.1} parent=1 // pred_region
      %s17 = ssub.s32 512, 512
      %18 = vsyncadd [#allocation3], %s17
      %s20 = sshll.u32 [#allocation2], 4
      %s21 = int_to_ptr.vmem [resolvable:$true] %s20
      %23 = dma.hbm_to_vmem [thread:$0]  %s0, 512, %s21, [#allocation3]
    $region5: #{tpu_custom_call.1} parent=1 // pred_fallthru
      _
    // Predicated region
    $region6: #{tpu_custom_call.1} parent=1 // pred_check
      _
    $region7: #{tpu_custom_call.1} parent=1 // pred_check_branch
      %25 = sbr.rel (0) target = $region9
    $region8: #{tpu_custom_call.1} parent=1 // pred_region
      %s27 = ssub.s32 512, 512
      %28 = vsyncadd [#allocation6], %s27
      %s30 = sshll.u32 [#allocation5], 4
      %s31 = int_to_ptr.vmem [resolvable:$true] %s30
      %33 = dma.hbm_to_vmem [thread:$0]  %s1, 512, %s31, [#allocation6]
    $region9: #{tpu_custom_call.1} parent=1 // pred_fallthru
      _
    // Predicated region
    $region10: #{tpu_custom_call.1} parent=1 // pred_check
      _
    $region11: #{tpu_custom_call.1} parent=1 // pred_check_branch
      %35 = sbr.rel (0) target = $region13
    $region12: #{tpu_custom_call.1} parent=1 // pred_region
      %s37 = ssub.s32 512, 512
      %38 = vsyncadd [#allocation6], %s37
      %s40 = sshll.u32 [#allocation7], 4
      %s41 = int_to_ptr.vmem [resolvable:$true] %s40
      %43 = dma.hbm_to_vmem [thread:$0]  %s2, 512, %s41, [#allocation6]
    $region13: #{tpu_custom_call.1} parent=1 // pred_fallthru
      _
    // Predicated region
    $region14: #{tpu_custom_call.1} parent=1 // pred_check
      _
    $region15: #{tpu_custom_call.1} parent=1 // pred_check_branch
      %45 = sbr.rel (0) target = $region17
    $region16: #{tpu_custom_call.1} parent=1 // pred_region
      %s47 = ssub.s32 512, 512
      %48 = vsyncadd [#allocation9], %s47
      %s50 = sshll.u32 [#allocation8], 4
      %s51 = int_to_ptr.vmem [resolvable:$true] %s50
      %53 = dma.hbm_to_vmem [thread:$0]  %s3, 512, %s51, [#allocation9]
    $region17: #{tpu_custom_call.1} parent=1 // pred_fallthru
      _
    // Predicated region
    $region18: #{tpu_custom_call.1} parent=1 // pred_check
      _
    $region19: #{tpu_custom_call.1} parent=1 // pred_check_branch
      %55 = sbr.rel (0) target = $region21
    $region20: #{tpu_custom_call.1} parent=1 // pred_region
      %s57 = ssub.s32 2048, 2048
      %58 = vsyncadd [#allocation9], %s57
      %s59 = sshll.u32 [#allocation10], 4
      %s60 = int_to_ptr.vmem [resolvable:$true] %s59
      %65 = dma.hbm_to_vmem [thread:$0]  %s4, 2048, %s60, [#allocation9], 512, 512, 32
    $region21: #{tpu_custom_call.1} parent=1 // pred_fallthru
      _
    // Predicated region
    $region22: #{tpu_custom_call.1} parent=1 // pred_check
      _
    $region23: #{tpu_custom_call.1} parent=1 // pred_check_branch
      %67 = sbr.rel (0) target = $region25
    $region24: #{tpu_custom_call.1} parent=1 // pred_region
      %68 = dma.done [#allocation3], 512
    $region25: #{tpu_custom_call.1} parent=1 // pred_fallthru
      _
    // Predicated region
    $region26: #{tpu_custom_call.1} parent=1 // pred_check
      _
    $region27: #{tpu_custom_call.1} parent=1 // pred_check_branch
      %70 = sbr.rel (0) target = $region29
    $region28: #{tpu_custom_call.1} parent=1 // pred_region
      %71 = dma.done [#allocation6], 512
    $region29: #{tpu_custom_call.1} parent=1 // pred_fallthru
      _
    // Predicated region
    $region30: #{tpu_custom_call.1} parent=1 // pred_check
      _
    $region31: #{tpu_custom_call.1} parent=1 // pred_check_branch
      %73 = sbr.rel (0) target = $region33
    $region32: #{tpu_custom_call.1} parent=1 // pred_region
      %74 = dma.done [#allocation6], 512
    $region33: #{tpu_custom_call.1} parent=1 // pred_fallthru
      _
    // Predicated region
    $region34: #{tpu_custom_call.1} parent=1 // pred_check
      _
    $region35: #{tpu_custom_call.1} parent=1 // pred_check_branch
      %76 = sbr.rel (0) target = $region37
    $region36: #{tpu_custom_call.1} parent=1 // pred_region
      %77 = dma.done [#allocation9], 512
    $region37: #{tpu_custom_call.1} parent=1 // pred_fallthru
      _
    // Predicated region
    $region38: #{tpu_custom_call.1} parent=1 // pred_check
      _
    $region39: #{tpu_custom_call.1} parent=1 // pred_check_branch
      %79 = sbr.rel (0) target = $region41
    $region40: #{tpu_custom_call.1} parent=1 // pred_region
      %80 = dma.done [#allocation9], 2048
    $region41: #{tpu_custom_call.1} parent=1 // pred_fallthru
      _
    %p81 = scmp.eq.s32.totalorder 0, 0
    // Predicated region
    $region42: #{tpu_custom_call.1} parent=1 // pred_check
      %p82 = pneg %p81
    $region43: #{tpu_custom_call.1} parent=1 // pred_check_branch
      %84 = sbr.rel (%p82) target = $region45
    $region44: #{tpu_custom_call.1} parent=1 // pred_region
      %v85 = vld [vmem:[#allocation2] sm:$0xff]
      %v86 = vld [vmem:[#allocation2 + $0x8] sm:$0xff]
      %v87 = vld [vmem:[#allocation2 + $0x10] sm:$0xff]
      %v88 = vld [vmem:[#allocation2 + $0x18] sm:$0xff]
      %89 = vst [vmem:[#allocation11] sm:$0xff] %v85
      %90 = vst [vmem:[#allocation11 + $0x8] sm:$0xff] %v86
      %91 = vst [vmem:[#allocation11 + $0x10] sm:$0xff] %v87
      %92 = vst [vmem:[#allocation11 + $0x18] sm:$0xff] %v88
    $region45: #{tpu_custom_call.1} parent=1 // pred_fallthru
      _
    %v93 = vld [vmem:[#allocation7] sm:$0xff]
    %v94 = vld [vmem:[#allocation7 + $0x8] sm:$0xff]
    %v95 = vld [vmem:[#allocation7 + $0x10] sm:$0xff]
    %v96 = vld [vmem:[#allocation7 + $0x18] sm:$0xff]
    %v97 = vld [vmem:[#allocation8] sm:$0xff]
    %v98 = vld [vmem:[#allocation8 + $0x8] sm:$0xff]
    %v99 = vld [vmem:[#allocation8 + $0x10] sm:$0xff]
    %v100 = vld [vmem:[#allocation8 + $0x18] sm:$0xff]
    %v101 = vld [vmem:[#allocation11] sm:$0xff]
    %v102 = vld [vmem:[#allocation11 + $0x8] sm:$0xff]
    %v103 = vld [vmem:[#allocation11 + $0x10] sm:$0xff]
    %v104 = vld [vmem:[#allocation11 + $0x18] sm:$0xff]
    %s105 = smul.u32 0, 4
    %s106 = scvt.s32.f32 %s105
    %v107 = vld [vmem:[#allocation5] sm:$0xff]
    %v108 = vld [vmem:[#allocation5 + $0x8] sm:$0xff]
    %v109 = vld [vmem:[#allocation5 + $0x10] sm:$0xff]
    %v110 = vld [vmem:[#allocation5 + $0x18] sm:$0xff]
    %v111 = vstv %s106
    %v112 = vmul.f32 %v111, %v93
    %v113 = vmul.f32 %v111, %v94
    %v114 = vmul.f32 %v111, %v95
    %v115 = vmul.f32 %v111, %v96
    %v116 = vadd.f32 %v107, %v112
    %v117 = vadd.f32 %v108, %v113
    %v118 = vadd.f32 %v109, %v114
    %v119 = vadd.f32 %v110, %v115
    %v120 = vrsqrt.pop %v116
    %v121 = vmul.f32 %v116, %v120
    %vm122 = vcmp.eq.f32.partialorder %v116, inf
    %v123 = vsel %vm122, %v116, %v121
    %vm124 = vcmp.eq.f32.partialorder %v116, 0.0
    %v125 = vand.u32 %v116, 2147483648
    %v126 = vsel %vm124, %v125, %v123
    %v127 = vrsqrt.pop %v117
    %v128 = vmul.f32 %v117, %v127
    %vm129 = vcmp.eq.f32.partialorder %v117, inf
    %v130 = vsel %vm129, %v117, %v128
    %vm131 = vcmp.eq.f32.partialorder %v117, 0.0
    %v132 = vand.u32 %v117, 2147483648
    %v133 = vsel %vm131, %v132, %v130
    %v134 = vrsqrt.pop %v118
    %v135 = vmul.f32 %v118, %v134
    %vm136 = vcmp.eq.f32.partialorder %v118, inf
    %v137 = vsel %vm136, %v118, %v135
    %vm138 = vcmp.eq.f32.partialorder %v118, 0.0
    %v139 = vand.u32 %v118, 2147483648
    %v140 = vsel %vm138, %v139, %v137
    %v141 = vrsqrt.pop %v119
    %v142 = vmul.f32 %v119, %v141
    %vm143 = vcmp.eq.f32.partialorder %v119, inf
    %v144 = vsel %vm143, %v119, %v142
    %vm145 = vcmp.eq.f32.partialorder %v119, 0.0
    %v146 = vand.u32 %v119, 2147483648
    %v147 = vsel %vm145, %v146, %v144
    %v148 = vld [vmem:[#allocation10] sm:$0xff]
    %v149 = vld [vmem:[#allocation10 + $0x8] sm:$0xff]
    %v150 = vld [vmem:[#allocation10 + $0x10] sm:$0xff]
    %v151 = vld [vmem:[#allocation10 + $0x18] sm:$0xff]
    %v152 = vmul.f32 %v126, %v148
    %v153 = vmul.f32 %v133, %v149
    %v154 = vmul.f32 %v140, %v150
    %v155 = vmul.f32 %v147, %v151
    %v156 = vadd.f32 %v101, %v152
    %v157 = vadd.f32 %v102, %v153
    %v158 = vadd.f32 %v103, %v154
    %v159 = vadd.f32 %v104, %v155
    %v160 = vadd.f32 %v116, %v93
    %v161 = vadd.f32 %v117, %v94
    %v162 = vadd.f32 %v118, %v95
    %v163 = vadd.f32 %v119, %v96
    %v164 = vrsqrt.pop %v160
    %v165 = vmul.f32 %v160, %v164
    %vm166 = vcmp.eq.f32.partialorder %v160, inf
    %v167 = vsel %vm166, %v160, %v165
    %vm168 = vcmp.eq.f32.partialorder %v160, 0.0
    %v169 = vand.u32 %v160, 2147483648
    %v170 = vsel %vm168, %v169, %v167
    %v171 = vrsqrt.pop %v161
    %v172 = vmul.f32 %v161, %v171
    %vm173 = vcmp.eq.f32.partialorder %v161, inf
    %v174 = vsel %vm173, %v161, %v172
    %vm175 = vcmp.eq.f32.partialorder %v161, 0.0
    %v176 = vand.u32 %v161, 2147483648
    %v177 = vsel %vm175, %v176, %v174
    %v178 = vrsqrt.pop %v162
    %v179 = vmul.f32 %v162, %v178
    %vm180 = vcmp.eq.f32.partialorder %v162, inf
    %v181 = vsel %vm180, %v162, %v179
    %vm182 = vcmp.eq.f32.partialorder %v162, 0.0
    %v183 = vand.u32 %v162, 2147483648
    %v184 = vsel %vm182, %v183, %v181
    %v185 = vrsqrt.pop %v163
    %v186 = vmul.f32 %v163, %v185
    %vm187 = vcmp.eq.f32.partialorder %v163, inf
    %v188 = vsel %vm187, %v163, %v186
    %vm189 = vcmp.eq.f32.partialorder %v163, 0.0
    %v190 = vand.u32 %v163, 2147483648
    %v191 = vsel %vm189, %v190, %v188
    %s192 = scalar_lea.vmem [#allocation10], 32
    %v193 = vld [vmem:[%s192] sm:$0xff]
    %v194 = vld [vmem:[%s192 + $0x8] sm:$0xff]
    %v195 = vld [vmem:[%s192 + $0x10] sm:$0xff]
    %v196 = vld [vmem:[%s192 + $0x18] sm:$0xff]
    %v197 = vmul.f32 %v170, %v193
    %v198 = vmul.f32 %v177, %v194
    %v199 = vmul.f32 %v184, %v195
    %v200 = vmul.f32 %v191, %v196
    %v201 = vadd.f32 %v156, %v197
    %v202 = vadd.f32 %v157, %v198
    %v203 = vadd.f32 %v158, %v199
    %v204 = vadd.f32 %v159, %v200
    %v205 = vadd.f32 %v160, %v93
    %v206 = vadd.f32 %v161, %v94
    %v207 = vadd.f32 %v162, %v95
    %v208 = vadd.f32 %v163, %v96
    %v209 = vrsqrt.pop %v205
    %v210 = vmul.f32 %v205, %v209
    %vm211 = vcmp.eq.f32.partialorder %v205, inf
    %v212 = vsel %vm211, %v205, %v210
    %vm213 = vcmp.eq.f32.partialorder %v205, 0.0
    %v214 = vand.u32 %v205, 2147483648
    %v215 = vsel %vm213, %v214, %v212
    %v216 = vrsqrt.pop %v206
    %v217 = vmul.f32 %v206, %v216
    %vm218 = vcmp.eq.f32.partialorder %v206, inf
    %v219 = vsel %vm218, %v206, %v217
    %vm220 = vcmp.eq.f32.partialorder %v206, 0.0
    %v221 = vand.u32 %v206, 2147483648
    %v222 = vsel %vm220, %v221, %v219
    %v223 = vrsqrt.pop %v207
    %v224 = vmul.f32 %v207, %v223
    %vm225 = vcmp.eq.f32.partialorder %v207, inf
    %v226 = vsel %vm225, %v207, %v224
    %vm227 = vcmp.eq.f32.partialorder %v207, 0.0
    %v228 = vand.u32 %v207, 2147483648
    %v229 = vsel %vm227, %v228, %v226
    %v230 = vrsqrt.pop %v208
    %v231 = vmul.f32 %v208, %v230
    %vm232 = vcmp.eq.f32.partialorder %v208, inf
    %v233 = vsel %vm232, %v208, %v231
    %vm234 = vcmp.eq.f32.partialorder %v208, 0.0
    %v235 = vand.u32 %v208, 2147483648
    %v236 = vsel %vm234, %v235, %v233
    %s237 = scalar_lea.vmem [#allocation10], 64
    %v238 = vld [vmem:[%s237] sm:$0xff]
    %v239 = vld [vmem:[%s237 + $0x8] sm:$0xff]
    %v240 = vld [vmem:[%s237 + $0x10] sm:$0xff]
    %v241 = vld [vmem:[%s237 + $0x18] sm:$0xff]
    %v242 = vmul.f32 %v215, %v238
    %v243 = vmul.f32 %v222, %v239
    %v244 = vmul.f32 %v229, %v240
    %v245 = vmul.f32 %v236, %v241
    %v246 = vadd.f32 %v201, %v242
    %v247 = vadd.f32 %v202, %v243
    %v248 = vadd.f32 %v203, %v244
    %v249 = vadd.f32 %v204, %v245
    %v250 = vadd.f32 %v205, %v93
    %v251 = vadd.f32 %v206, %v94
    %v252 = vadd.f32 %v207, %v95
    %v253 = vadd.f32 %v208, %v96
    %v254 = vrsqrt.pop %v250
    %v255 = vmul.f32 %v250, %v254
    %vm256 = vcmp.eq.f32.partialorder %v250, inf
    %v257 = vsel %vm256, %v250, %v255
    %vm258 = vcmp.eq.f32.partialorder %v250, 0.0
    %v259 = vand.u32 %v250, 2147483648
    %v260 = vsel %vm258, %v259, %v257
    %v261 = vrsqrt.pop %v251
    %v262 = vmul.f32 %v251, %v261
    %vm263 = vcmp.eq.f32.partialorder %v251, inf
    %v264 = vsel %vm263, %v251, %v262
    %vm265 = vcmp.eq.f32.partialorder %v251, 0.0
    %v266 = vand.u32 %v251, 2147483648
    %v267 = vsel %vm265, %v266, %v264
    %v268 = vrsqrt.pop %v252
    %v269 = vmul.f32 %v252, %v268
    %vm270 = vcmp.eq.f32.partialorder %v252, inf
    %v271 = vsel %vm270, %v252, %v269
    %vm272 = vcmp.eq.f32.partialorder %v252, 0.0
    %v273 = vand.u32 %v252, 2147483648
    %v274 = vsel %vm272, %v273, %v271
    %v275 = vrsqrt.pop %v253
    %v276 = vmul.f32 %v253, %v275
    %vm277 = vcmp.eq.f32.partialorder %v253, inf
    %v278 = vsel %vm277, %v253, %v276
    %vm279 = vcmp.eq.f32.partialorder %v253, 0.0
    %v280 = vand.u32 %v253, 2147483648
    %v281 = vsel %vm279, %v280, %v278
    %s282 = scalar_lea.vmem [#allocation10], 96
    %v283 = vld [vmem:[%s282] sm:$0xff]
    %v284 = vld [vmem:[%s282 + $0x8] sm:$0xff]
    %v285 = vld [vmem:[%s282 + $0x10] sm:$0xff]
    %v286 = vld [vmem:[%s282 + $0x18] sm:$0xff]
    %v287 = vmul.f32 %v260, %v283
    %v288 = vmul.f32 %v267, %v284
    %v289 = vmul.f32 %v274, %v285
    %v290 = vmul.f32 %v281, %v286
    %v291 = vadd.f32 %v246, %v287
    %v292 = vadd.f32 %v247, %v288
    %v293 = vadd.f32 %v248, %v289
    %v294 = vadd.f32 %v249, %v290
    %v295 = vfloor.f32 %v291
    %v296 = vfloor.f32 %v292
    %v297 = vfloor.f32 %v293
    %v298 = vfloor.f32 %v294
    %v299 = vmul.f32 %v97, %v295
    %v300 = vmul.f32 %v98, %v296
    %v301 = vmul.f32 %v99, %v297
    %v302 = vmul.f32 %v100, %v298
    %v303 = vsub.f32 %v291, %v299
    %v304 = vsub.f32 %v292, %v300
    %v305 = vsub.f32 %v293, %v301
    %v306 = vsub.f32 %v294, %v302
    %307 = vst [vmem:[#allocation11] sm:$0xff] %v303
    %308 = vst [vmem:[#allocation11 + $0x8] sm:$0xff] %v304
    %309 = vst [vmem:[#allocation11 + $0x10] sm:$0xff] %v305
    %310 = vst [vmem:[#allocation11 + $0x18] sm:$0xff] %v306
    // Predicated region
    $region46: #{tpu_custom_call.1} parent=1 // pred_check
      %p311 = pneg %p81
    $region47: #{tpu_custom_call.1} parent=1 // pred_check_branch
      %313 = sbr.rel (%p311) target = $region49
    $region48: #{tpu_custom_call.1} parent=1 // pred_region
      %v314 = vld [vmem:[#allocation2] sm:$0xff]
      %v315 = vld [vmem:[#allocation2 + $0x8] sm:$0xff]
      %v316 = vld [vmem:[#allocation2 + $0x10] sm:$0xff]
      %v317 = vld [vmem:[#allocation2 + $0x18] sm:$0xff]
      %v318 = vsub.f32 %v303, %v314
      %v319 = vsub.f32 %v304, %v315
      %v320 = vsub.f32 %v305, %v316
      %v321 = vsub.f32 %v306, %v317
      %v322 = vadd.f32 %v318, 0.5
      %v323 = vadd.f32 %v319, 0.5
      %v324 = vadd.f32 %v320, 0.5
      %v325 = vadd.f32 %v321, 0.5
      %v326 = vfloor.f32 %v322
      %v327 = vfloor.f32 %v323
      %v328 = vfloor.f32 %v324
      %v329 = vfloor.f32 %v325
      %v330 = vmul.f32 %v97, %v326
      %v331 = vmul.f32 %v98, %v327
      %v332 = vmul.f32 %v99, %v328
      %v333 = vmul.f32 %v100, %v329
      %v334 = vsub.f32 %v318, %v330
      %v335 = vsub.f32 %v319, %v331
      %v336 = vsub.f32 %v320, %v332
      %v337 = vsub.f32 %v321, %v333
      %s338 = scalar_lea.vmem [#allocation11], 32
      %339 = vst [vmem:[%s338] sm:$0xff] %v334
      %340 = vst [vmem:[%s338 + $0x8] sm:$0xff] %v335
      %341 = vst [vmem:[%s338 + $0x10] sm:$0xff] %v336
      %342 = vst [vmem:[%s338 + $0x18] sm:$0xff] %v337
    $region49: #{tpu_custom_call.1} parent=1 // pred_fallthru
      _
    // Predicated region
    $region50: #{tpu_custom_call.1} parent=1 // pred_check
      _
    $region51: #{tpu_custom_call.1} parent=1 // pred_check_branch
      %344 = sbr.rel (0) target = $region53
    $region52: #{tpu_custom_call.1} parent=1 // pred_region
      %s346 = ssub.s32 1024, 1024
      %347 = vsyncadd [#allocation4], %s346
      %s348 = sshll.u32 [#allocation11], 4
      %s349 = int_to_ptr.vmem [resolvable:$true] %s348
      %354 = dma.vmem_to_hbm [thread:$0]  %s349, 1024, %s5, [#allocation4], 512, 512, 32
    $region53: #{tpu_custom_call.1} parent=1 // pred_fallthru
      _
    // Predicated region
    $region54: #{tpu_custom_call.1} parent=1 // pred_check
      _
    $region55: #{tpu_custom_call.1} parent=1 // pred_check_branch
      %356 = sbr.rel (0) target = $region57
    $region56: #{tpu_custom_call.1} parent=1 // pred_region
      %357 = dma.done [#allocation4], 1024
    $region57: #{tpu_custom_call.1} parent=1 // pred_fallthru
      _
    %358 = vsyncpa [#allocation3], 1
    %359 = vsyncpa [#allocation6], 1
    %360 = vsyncpa [#allocation9], 1
    %361 = vsyncpa [#allocation4], 1

</llo_original>
